<compile_context>
chip_gen: v7x
topology: tpu7x:2x2x1
jax: 0.10.0
libtpu: 0.0.40
codegen_flags: <defaults>
</compile_context>

<pallas_src>
import functools

import jax
import jax.numpy as jnp
from jax import lax
from jax.experimental import pallas as pl
from jax.experimental.pallas import tpu as pltpu


# ----------------------------------------------------------------------------
# Tiling helpers
# ----------------------------------------------------------------------------
def _vmem_capacity_bytes():
    """Physical VMEM of the local TPU (fallback: 128 MiB = v5e/v6e)."""
    try:
        cap = getattr(pltpu.get_tpu_info(), "vmem_capacity_bytes", None)
        if cap:
            return int(cap)
    except Exception:
        pass
    return 128 << 20


def _choose_tile_rows(R, C, x_itemsize, override=None):
    """Rows of 128 pixels processed per grid step.

    Targets a ~4 MiB (single-buffer) x tile so the per-grid-step overhead
    (~0.35 us) is small vs. the HBM stream time on all generations, while the
    double-buffered footprint stays far below every generation's VMEM.
    """
    if override is not None:
        tr = int(override)
        if tr >= R:
            return R
        assert tr % 8 == 0, "tile_rows must be a multiple of 8 (or >= R)"
        return tr
    vmem = _vmem_capacity_bytes()
    tile_budget = max(512 << 10, min(4 << 20, vmem // 12))
    cap = tile_budget // max(1, C * 128 * x_itemsize)
    cap = max(8, (cap // 8) * 8)
    if R <= cap:
        return R          # full extent is always a legal block
    return cap            # multiple of 8; tail tile is row-masked in-kernel


def _acc_rows(tile_rows):
    """Sublane extent of the resident accumulator block."""
    return 8 if tile_rows % 8 == 0 else tile_rows


def _fold_rows(v):
    """(TR, 128) -> (8, 128) partial sum (pure VPU adds, no cross-lane work)."""
    tr = v.shape[0]
    if tr % 8 == 0 and tr > 8:
        return jnp.sum(v.reshape(tr // 8, 8, 128), axis=0)
    return v


# ----------------------------------------------------------------------------
# Kernel bodies
# ----------------------------------------------------------------------------
def _entropy_body(x_ref, num_ch):
    """Per-pixel b = sum_c softmax*log_softmax, shape (TR, 128) f32.

    Statically unrolled over the (small) channel axis so only ~4 (TR, 128)
    f32 temporaries are ever live (VMEM-friendly at large TR).
    """
    # Pass 1: channel max (plain VPU max, one channel slab live at a time).
    xmax = x_ref[0].astype(jnp.float32)
    for c in range(1, num_ch):
        xmax = jnp.maximum(xmax, x_ref[c].astype(jnp.float32))
    # Pass 2: denom = sum_c exp(xs), num = sum_c exp(xs)*xs.
    denom = jnp.zeros_like(xmax)
    num = jnp.zeros_like(xmax)
    for c in range(num_ch):
        xs = x_ref[c].astype(jnp.float32) - xmax
        e = jnp.exp(xs)
        denom = denom + e
        num = num + e * xs
    # b = num/denom - log(denom); EUP approx reciprocal + one Newton step.
    r = pl.reciprocal(denom, approx=True)
    r = r * (2.0 - denom * r)
    return num * r - jnp.log(denom)


def _row_mask(tile_rows, valid_rows):
    row_id = lax.broadcasted_iota(jnp.int32, (tile_rows, 128), 0)
    return row_id < valid_rows


def _entropy_masked_kernel(x_ref, m_ref, e_ref, msum_ref, *,
                           num_ch, tile_rows, total_rows, steps_per_shard,
                           mask_tail):
    p = pl.program_id(2)

    @pl.when(p == 0)
    def _init():
        e_ref[...] = jnp.zeros_like(e_ref)
        msum_ref[...] = jnp.zeros_like(msum_ref)

    b = _entropy_body(x_ref, num_ch)                                # (TR, 128)
    m = 1.0 - m_ref[...].astype(jnp.float32) * (1.0 / 255.0)        # (TR, 128)

    if mask_tail:
        g = pl.program_id(1) * steps_per_shard + p                  # global block
        rmask = _row_mask(tile_rows, total_rows - g * tile_rows)
        zero = jnp.float32(0.0)
        b = jnp.where(rmask, b, zero)
        m = jnp.where(rmask, m, zero)

    e_ref[...] += _fold_rows(b * m)
    msum_ref[...] += _fold_rows(m)


def _entropy_plain_kernel(x_ref, e_ref, *, num_ch, tile_rows, total_rows,
                          steps_per_shard, mask_tail):
    p = pl.program_id(2)

    @pl.when(p == 0)
    def _init():
        e_ref[...] = jnp.zeros_like(e_ref)

    b = _entropy_body(x_ref, num_ch)
    if mask_tail:
        g = pl.program_id(1) * steps_per_shard + p
        rmask = _row_mask(tile_rows, total_rows - g * tile_rows)
        b = jnp.where(rmask, b, jnp.float32(0.0))
    e_ref[...] += _fold_rows(b)


# ----------------------------------------------------------------------------
# Wrapper
# ----------------------------------------------------------------------------
def entropy_loss(x, mask=None, mode=1, *, tile_rows=None, pixel_shards=None):
    """x: (N, C, H, W) logits; mask: (N, H, W) with values in [0, 255].

    x may be float32 or bfloat16; mask may be any real dtype (uint8
    recommended) -- both are upcast to float32 inside the kernel.
    """
    N, C, H, W = x.shape
    HW = H * W
    # TODO(synk): H*W not a multiple of 128 would additionally need a lane
    # mask on the last 128-wide column; not implemented.
    assert HW % 128 == 0, "H*W must be a multiple of 128 (lane width)"
    R = HW // 128

    TR = _choose_tile_rows(R, C, jnp.dtype(x.dtype).itemsize, tile_rows)
    AR = _acc_rows(TR)
    n_pix_blocks = pl.cdiv(R, TR)

    # Second "parallel" grid axis over pixels: keeps both v7x TensorCores busy
    # when the batch is small.  Near-neutral on single-TC chips.
    if pixel_shards is None:
        shards = 2 if (N == 1 and n_pix_blocks >= 2) else 1
    else:
        shards = max(1, int(pixel_shards))
    shards = min(shards, n_pix_blocks)
    sps = pl.cdiv(n_pix_blocks, shards)            # pixel steps per shard
    mask_tail = (shards * sps * TR != R)           # tail / overhang rows exist
    clamp = (shards * sps > n_pix_blocks)          # fully-overhanging steps exist

    def pix_block(s, p):
        g = s * sps + p
        return jnp.minimum(g, n_pix_blocks - 1) if clamp else g

    grid = (N, shards, sps)

    # Free reshapes -- no transpose, no extra HBM round-trip.
    x4 = x.reshape(N, C, R, 128)

    x_spec = pl.BlockSpec((None, C, TR, 128),
                          lambda n, s, p: (n, 0, pix_block(s, p), 0))
    out_spec = pl.BlockSpec((None, None, AR, 128),
                            lambda n, s, p: (n, s, 0, 0))

    # Explicit VMEM budget: double-buffered input tiles + generous headroom
    # for the f32 temporaries inside the channel loop.
    vmem_cap = _vmem_capacity_bytes()
    x_bytes = 2 * C * TR * 128 * jnp.dtype(x.dtype).itemsize
    m_bytes = (2 * TR * 128 * jnp.dtype(mask.dtype).itemsize) if mode == 1 else 0
    tmp_bytes = 16 * TR * 128 * 4
    vmem_limit = int(min(0.8 * vmem_cap,
                         max(16 << 20, x_bytes + m_bytes + tmp_bytes + (2 << 20))))
    cparams = pltpu.CompilerParams(
        dimension_semantics=("parallel", "parallel", "arbitrary"),
        vmem_limit_bytes=vmem_limit,
    )

    common = dict(num_ch=C, tile_rows=TR, total_rows=R,
                  steps_per_shard=sps, mask_tail=mask_tail)

    if mode == 1:
        m3 = mask.reshape(N, R, 128)               # producer dtype; cast in-kernel
        m_spec = pl.BlockSpec((None, TR, 128),
                              lambda n, s, p: (n, pix_block(s, p), 0))
        e_part, m_part = pl.pallas_call(
            functools.partial(_entropy_masked_kernel, **common),
            out_shape=(
                jax.ShapeDtypeStruct((N, shards, AR, 128), jnp.float32),
                jax.ShapeDtypeStruct((N, shards, AR, 128), jnp.float32),
            ),
            grid_spec=pltpu.PrefetchScalarGridSpec(
                num_scalar_prefetch=0,
                grid=grid,
                in_specs=[x_spec, m_spec],
                out_specs=[out_spec, out_spec],
            ),
            compiler_params=cparams,
        )(x4, m3)
        # Tiny final reductions over the (N, shards, AR, 128) partials.
        return -1.0 * jnp.sum(e_part) / jnp.sum(m_part)

    # mode != 1: mask is unused -> do not stream it at all; denominator = N*H*W.
    e_part = pl.pallas_call(
        functools.partial(_entropy_plain_kernel, **common),
        out_shape=jax.ShapeDtypeStruct((N, shards, AR, 128), jnp.float32),
        grid_spec=pltpu.PrefetchScalarGridSpec(
            num_scalar_prefetch=0,
            grid=grid,
            in_specs=[x_spec],
            out_specs=out_spec,
        ),
        compiler_params=cparams,
    )(x4)
    return -1.0 * jnp.sum(e_part) / float(N * HW)


# ----------------------------------------------------------------------------
# Pure-JAX reference (mirrors the PyTorch module)
# ----------------------------------------------------------------------------
def _reference_entropy_loss(x, mask, mode=1):
    xf = x.astype(jnp.float32)
    b = jax.nn.softmax(xf, axis=1) * jax.nn.log_softmax(xf, axis=1)
    b = jnp.sum(b, axis=1)  # (N, H, W)
    if mode == 1:
        m = 1.0 - mask.astype(jnp.float32) / 255.0
        return -1.0 * jnp.sum(b * m) / jnp.sum(m)
    return -1.0 * jnp.mean(b)


if __name__ == "__main__":
    key = jax.random.PRNGKey(0)
    kx, km, kx2, km2 = jax.random.split(key, 4)

    # Base case from the module spec.
    N, C, H, W = 2, 4, 16, 16
    x = jax.random.normal(kx, (N, C, H, W), dtype=jnp.float32)
    mask = jax.random.uniform(km, (N, H, W), minval=0.0, maxval=255.0,
                              dtype=jnp.float32)

    loss = entropy_loss(x, mask, mode=1)
    jax.block_until_ready(loss)
    ref = _reference_entropy_loss(x, mask, mode=1)
    assert jnp.allclose(loss, ref, rtol=1e-4, atol=1e-4), (loss, ref)

    loss2 = entropy_loss(x, mask, mode=2)
    jax.block_until_ready(loss2)
    ref2 = _reference_entropy_loss(x, mask, mode=2)
    assert jnp.allclose(loss2, ref2, rtol=1e-4, atol=1e-4), (loss2, ref2)

    # Exercise the pixel-shard axis, the non-divisible/tail-masked path, the
    # clamped overhang-step path, and the uint8-mask entry contract.
    N2, C2, H2, W2 = 1, 4, 48, 64       # H*W = 3072 -> R = 24 pixel rows
    x2 = jax.random.normal(kx2, (N2, C2, H2, W2), dtype=jnp.float32)
    m2u8 = jax.random.randint(km2, (N2, H2, W2), 0, 256,
                              dtype=jnp.int32).astype(jnp.uint8)
    ref3 = _reference_entropy_loss(x2, m2u8, mode=1)
    for tr, sh in ((16, 1), (8, 2), (None, None)):
        l3 = entropy_loss(x2, m2u8, mode=1, tile_rows=tr, pixel_shards=sh)
        jax.block_until_ready(l3)
        assert jnp.allclose(l3, ref3, rtol=1e-4, atol=1e-4), (tr, sh, l3, ref3)

    # mode=2 with a masked tail tile (plain kernel path).
    l4 = entropy_loss(x2, m2u8, mode=2, tile_rows=16, pixel_shards=1)
    jax.block_until_ready(l4)
    ref4 = _reference_entropy_loss(x2, m2u8, mode=2)
    assert jnp.allclose(l4, ref4, rtol=1e-4, atol=1e-4), (l4, ref4)

    # bf16 logits: halves the dominant HBM stream; kernel upcasts internally.
    xb = x2.astype(jnp.bfloat16)
    lb = entropy_loss(xb, m2u8, mode=1)
    jax.block_until_ready(lb)
    refb = _reference_entropy_loss(xb.astype(jnp.float32), m2u8, mode=1)
    assert jnp.allclose(lb, refb, rtol=1e-3, atol=1e-3), (lb, refb)

    print("KERNEL_OK")
</pallas_src>

<mosaic_0001>
module attributes {stable_mosaic.version = 11 : i64} {
  func.func @_entropy_masked_kernel(%arg0: i32, %arg1: i32, %arg2: i32, %arg3: memref<1x4x2x128xf32, #tpu.memory_space<vmem>>, %arg4: memref<1x2x128xf32, #tpu.memory_space<vmem>>, %arg5: memref<1x1x2x128xf32, #tpu.memory_space<vmem>>, %arg6: memref<1x1x2x128xf32, #tpu.memory_space<vmem>>) attributes {dimension_semantics = [#tpu.dimension_semantics<parallel>, #tpu.dimension_semantics<parallel>, #tpu.dimension_semantics<arbitrary>], iteration_bounds = array<i64: 2, 1, 1>, scalar_prefetch = 0 : i64, scratch_operands = 0 : i64, tpu.core_type = #tpu.core_type<tc>, window_params = [{transform_indices = @transform_0, window_bounds = array<i64: 1, 4, 2, 128>}, {transform_indices = @transform_1, window_bounds = array<i64: 1, 2, 128>}, {transform_indices = @transform_2, window_bounds = array<i64: 1, 1, 2, 128>}, {transform_indices = @transform_3, window_bounds = array<i64: 1, 1, 2, 128>}]} {
    %c0_i32 = arith.constant 0 : i32
    %0 = arith.cmpi eq, %arg2, %c0_i32 : i32
    %1 = arith.extui %0 : i1 to i32
    %c0_i32_0 = arith.constant 0 : i32
    %2 = arith.cmpi ne, %1, %c0_i32_0 : i32
    scf.if %2 {
      %cst_52 = arith.constant 0.000000e+00 : f32
      %71 = vector.broadcast %cst_52 : f32 to vector<2x128xf32>
      %c0_53 = arith.constant 0 : index
      %c0_54 = arith.constant 0 : index
      %c0_55 = arith.constant 0 : index
      %c0_56 = arith.constant 0 : index
      %72 = vector.load %arg5[%c0_53, %c0_54, %c0_55, %c0_56] : memref<1x1x2x128xf32, #tpu.memory_space<vmem>>, vector<1x1x2x128xf32>
      %73 = vector.shape_cast %72 : vector<1x1x2x128xf32> to vector<2x128xf32>
      %74 = vector.shape_cast %71 : vector<2x128xf32> to vector<1x1x2x128xf32>
      tpu.vector_store %arg5[%c0_53, %c0_54, %c0_55, %c0_56], %74 {strides = array<i32>} : memref<1x1x2x128xf32, #tpu.memory_space<vmem>>, vector<1x1x2x128xf32>,
      %cst_57 = arith.constant 0.000000e+00 : f32
      %75 = vector.broadcast %cst_57 : f32 to vector<2x128xf32>
      %c0_58 = arith.constant 0 : index
      %c0_59 = arith.constant 0 : index
      %c0_60 = arith.constant 0 : index
      %c0_61 = arith.constant 0 : index
      %76 = vector.load %arg6[%c0_58, %c0_59, %c0_60, %c0_61] : memref<1x1x2x128xf32, #tpu.memory_space<vmem>>, vector<1x1x2x128xf32>
      %77 = vector.shape_cast %76 : vector<1x1x2x128xf32> to vector<2x128xf32>
      %78 = vector.shape_cast %75 : vector<2x128xf32> to vector<1x1x2x128xf32>
      tpu.vector_store %arg6[%c0_58, %c0_59, %c0_60, %c0_61], %78 {strides = array<i32>} : memref<1x1x2x128xf32, #tpu.memory_space<vmem>>, vector<1x1x2x128xf32>,
    } else {
    }
    %c0 = arith.constant 0 : index
    %c0_1 = arith.constant 0 : index
    %c0_2 = arith.constant 0 : index
    %c0_3 = arith.constant 0 : index
    %3 = vector.load %arg3[%c0, %c0_1, %c0_2, %c0_3] : memref<1x4x2x128xf32, #tpu.memory_space<vmem>>, vector<1x1x2x128xf32>
    %4 = vector.shape_cast %3 : vector<1x1x2x128xf32> to vector<2x128xf32>
    %c0_4 = arith.constant 0 : index
    %c1 = arith.constant 1 : index
    %c0_5 = arith.constant 0 : index
    %c0_6 = arith.constant 0 : index
    %5 = vector.load %arg3[%c0_4, %c1, %c0_5, %c0_6] : memref<1x4x2x128xf32, #tpu.memory_space<vmem>>, vector<1x1x2x128xf32>
    %6 = vector.shape_cast %5 : vector<1x1x2x128xf32> to vector<2x128xf32>
    %7 = arith.maximumf %4, %6 : vector<2x128xf32>
    %c0_7 = arith.constant 0 : index
    %c2 = arith.constant 2 : index
    %c0_8 = arith.constant 0 : index
    %c0_9 = arith.constant 0 : index
    %8 = vector.load %arg3[%c0_7, %c2, %c0_8, %c0_9] : memref<1x4x2x128xf32, #tpu.memory_space<vmem>>, vector<1x1x2x128xf32>
    %9 = vector.shape_cast %8 : vector<1x1x2x128xf32> to vector<2x128xf32>
    %10 = arith.maximumf %7, %9 : vector<2x128xf32>
    %c0_10 = arith.constant 0 : index
    %c3 = arith.constant 3 : index
    %c0_11 = arith.constant 0 : index
    %c0_12 = arith.constant 0 : index
    %11 = vector.load %arg3[%c0_10, %c3, %c0_11, %c0_12] : memref<1x4x2x128xf32, #tpu.memory_space<vmem>>, vector<1x1x2x128xf32>
    %12 = vector.shape_cast %11 : vector<1x1x2x128xf32> to vector<2x128xf32>
    %13 = arith.maximumf %10, %12 : vector<2x128xf32>
    %cst = arith.constant 0.000000e+00 : f32
    %14 = vector.broadcast %cst : f32 to vector<2x128xf32>
    %cst_13 = arith.constant 0.000000e+00 : f32
    %15 = vector.broadcast %cst_13 : f32 to vector<2x128xf32>
    %c0_14 = arith.constant 0 : index
    %c0_15 = arith.constant 0 : index
    %c0_16 = arith.constant 0 : index
    %c0_17 = arith.constant 0 : index
    %16 = vector.load %arg3[%c0_14, %c0_15, %c0_16, %c0_17] : memref<1x4x2x128xf32, #tpu.memory_space<vmem>>, vector<1x1x2x128xf32>
    %17 = vector.shape_cast %16 : vector<1x1x2x128xf32> to vector<2x128xf32>
    %18 = arith.subf %17, %13 : vector<2x128xf32>
    %19 = math.exp %18 : vector<2x128xf32>
    %20 = arith.addf %14, %19 : vector<2x128xf32>
    %21 = arith.mulf %19, %18 : vector<2x128xf32>
    %22 = arith.addf %15, %21 : vector<2x128xf32>
    %c0_18 = arith.constant 0 : index
    %c1_19 = arith.constant 1 : index
    %c0_20 = arith.constant 0 : index
    %c0_21 = arith.constant 0 : index
    %23 = vector.load %arg3[%c0_18, %c1_19, %c0_20, %c0_21] : memref<1x4x2x128xf32, #tpu.memory_space<vmem>>, vector<1x1x2x128xf32>
    %24 = vector.shape_cast %23 : vector<1x1x2x128xf32> to vector<2x128xf32>
    %25 = arith.subf %24, %13 : vector<2x128xf32>
    %26 = math.exp %25 : vector<2x128xf32>
    %27 = arith.addf %20, %26 : vector<2x128xf32>
    %28 = arith.mulf %26, %25 : vector<2x128xf32>
    %29 = arith.addf %22, %28 : vector<2x128xf32>
    %c0_22 = arith.constant 0 : index
    %c2_23 = arith.constant 2 : index
    %c0_24 = arith.constant 0 : index
    %c0_25 = arith.constant 0 : index
    %30 = vector.load %arg3[%c0_22, %c2_23, %c0_24, %c0_25] : memref<1x4x2x128xf32, #tpu.memory_space<vmem>>, vector<1x1x2x128xf32>
    %31 = vector.shape_cast %30 : vector<1x1x2x128xf32> to vector<2x128xf32>
    %32 = arith.subf %31, %13 : vector<2x128xf32>
    %33 = math.exp %32 : vector<2x128xf32>
    %34 = arith.addf %27, %33 : vector<2x128xf32>
    %35 = arith.mulf %33, %32 : vector<2x128xf32>
    %36 = arith.addf %29, %35 : vector<2x128xf32>
    %c0_26 = arith.constant 0 : index
    %c3_27 = arith.constant 3 : index
    %c0_28 = arith.constant 0 : index
    %c0_29 = arith.constant 0 : index
    %37 = vector.load %arg3[%c0_26, %c3_27, %c0_28, %c0_29] : memref<1x4x2x128xf32, #tpu.memory_space<vmem>>, vector<1x1x2x128xf32>
    %38 = vector.shape_cast %37 : vector<1x1x2x128xf32> to vector<2x128xf32>
    %39 = arith.subf %38, %13 : vector<2x128xf32>
    %40 = math.exp %39 : vector<2x128xf32>
    %41 = arith.addf %34, %40 : vector<2x128xf32>
    %42 = arith.mulf %40, %39 : vector<2x128xf32>
    %43 = arith.addf %36, %42 : vector<2x128xf32>
    %44 = tpu.reciprocal %41 {approx = true} : vector<2x128xf32> -> vector<2x128xf32>
    %45 = arith.mulf %41, %44 : vector<2x128xf32>
    %cst_30 = arith.constant 2.000000e+00 : f32
    %46 = vector.broadcast %cst_30 : f32 to vector<2x128xf32>
    %47 = arith.subf %46, %45 : vector<2x128xf32>
    %48 = arith.mulf %44, %47 : vector<2x128xf32>
    %49 = arith.mulf %43, %48 : vector<2x128xf32>
    %50 = math.log %41 : vector<2x128xf32>
    %51 = arith.subf %49, %50 : vector<2x128xf32>
    %c0_31 = arith.constant 0 : index
    %c0_32 = arith.constant 0 : index
    %c0_33 = arith.constant 0 : index
    %52 = vector.load %arg4[%c0_31, %c0_32, %c0_33] : memref<1x2x128xf32, #tpu.memory_space<vmem>>, vector<1x2x128xf32>
    %53 = vector.shape_cast %52 : vector<1x2x128xf32> to vector<2x128xf32>
    %cst_34 = arith.constant 0.00392156886 : f32
    %54 = vector.broadcast %cst_34 : f32 to vector<2x128xf32>
    %55 = arith.mulf %53, %54 : vector<2x128xf32>
    %cst_35 = arith.constant 1.000000e+00 : f32
    %56 = vector.broadcast %cst_35 : f32 to vector<2x128xf32>
    %57 = arith.subf %56, %55 : vector<2x128xf32>
    %c0_36 = arith.constant 0 : index
    %c0_37 = arith.constant 0 : index
    %c0_38 = arith.constant 0 : index
    %c0_39 = arith.constant 0 : index
    %58 = vector.load %arg5[%c0_36, %c0_37, %c0_38, %c0_39] : memref<1x1x2x128xf32, #tpu.memory_space<vmem>>, vector<1x1x2x128xf32>
    %59 = vector.shape_cast %58 : vector<1x1x2x128xf32> to vector<2x128xf32>
    %60 = arith.mulf %51, %57 : vector<2x128xf32>
    %61 = arith.addf %59, %60 : vector<2x128xf32>
    %c0_40 = arith.constant 0 : index
    %c0_41 = arith.constant 0 : index
    %c0_42 = arith.constant 0 : index
    %c0_43 = arith.constant 0 : index
    %62 = vector.load %arg5[%c0_40, %c0_41, %c0_42, %c0_43] : memref<1x1x2x128xf32, #tpu.memory_space<vmem>>, vector<1x1x2x128xf32>
    %63 = vector.shape_cast %62 : vector<1x1x2x128xf32> to vector<2x128xf32>
    %64 = vector.shape_cast %61 : vector<2x128xf32> to vector<1x1x2x128xf32>
    tpu.vector_store %arg5[%c0_40, %c0_41, %c0_42, %c0_43], %64 {strides = array<i32>} : memref<1x1x2x128xf32, #tpu.memory_space<vmem>>, vector<1x1x2x128xf32>,
    %c0_44 = arith.constant 0 : index
    %c0_45 = arith.constant 0 : index
    %c0_46 = arith.constant 0 : index
    %c0_47 = arith.constant 0 : index
    %65 = vector.load %arg6[%c0_44, %c0_45, %c0_46, %c0_47] : memref<1x1x2x128xf32, #tpu.memory_space<vmem>>, vector<1x1x2x128xf32>
    %66 = vector.shape_cast %65 : vector<1x1x2x128xf32> to vector<2x128xf32>
    %67 = arith.addf %66, %57 : vector<2x128xf32>
    %c0_48 = arith.constant 0 : index
    %c0_49 = arith.constant 0 : index
    %c0_50 = arith.constant 0 : index
    %c0_51 = arith.constant 0 : index
    %68 = vector.load %arg6[%c0_48, %c0_49, %c0_50, %c0_51] : memref<1x1x2x128xf32, #tpu.memory_space<vmem>>, vector<1x1x2x128xf32>
    %69 = vector.shape_cast %68 : vector<1x1x2x128xf32> to vector<2x128xf32>
    %70 = vector.shape_cast %67 : vector<2x128xf32> to vector<1x1x2x128xf32>
    tpu.vector_store %arg6[%c0_48, %c0_49, %c0_50, %c0_51], %70 {strides = array<i32>} : memref<1x1x2x128xf32, #tpu.memory_space<vmem>>, vector<1x1x2x128xf32>,
    return
  }
  func.func @transform_0(%arg0: i32, %arg1: i32, %arg2: i32) -> (i32, i32, i32, i32) {
    %c1_i32 = arith.constant 1 : i32
    %0 = arith.muli %arg1, %c1_i32 : i32
    %1 = arith.addi %0, %arg2 : i32
    %c0_i32 = arith.constant 0 : i32
    %c0_i32_0 = arith.constant 0 : i32
    %c0_i32_1 = arith.constant 0 : i32
    return %arg0, %c0_i32, %1, %c0_i32_0 : i32, i32, i32, i32
  }
  func.func @transform_1(%arg0: i32, %arg1: i32, %arg2: i32) -> (i32, i32, i32) {
    %c1_i32 = arith.constant 1 : i32
    %0 = arith.muli %arg1, %c1_i32 : i32
    %1 = arith.addi %0, %arg2 : i32
    %c0_i32 = arith.constant 0 : i32
    %c0_i32_0 = arith.constant 0 : i32
    return %arg0, %1, %c0_i32 : i32, i32, i32
  }
  func.func @transform_2(%arg0: i32, %arg1: i32, %arg2: i32) -> (i32, i32, i32, i32) {
    %c0_i32 = arith.constant 0 : i32
    %c0_i32_0 = arith.constant 0 : i32
    %c0_i32_1 = arith.constant 0 : i32
    return %arg0, %arg1, %c0_i32, %c0_i32_0 : i32, i32, i32, i32
  }
  func.func @transform_3(%arg0: i32, %arg1: i32, %arg2: i32) -> (i32, i32, i32, i32) {
    %c0_i32 = arith.constant 0 : i32
    %c0_i32_0 = arith.constant 0 : i32
    %c0_i32_1 = arith.constant 0 : i32
    return %arg0, %arg1, %c0_i32, %c0_i32_0 : i32, i32, i32, i32
  }
}

</mosaic_0001>

<llo_original>
// kernel: tpu_custom_call.1
$region0: #{tpu_custom_call.1}
  #allocation0 [shape = 'u32[]', space=smem, size = 0x4, offset = 0x4, fixed_abs, tag = 'smem constant byte address 0x4 - core index']
  #allocation1 [shape = 'u32[144,128]{1,0:T(1,128)}', space=vmem, size = 0x12000, scoped, tag = 'internal scratch']
  %s0 = inlined_call_operand.hbm [shape: f32[2,4,2,128], index: 0, kind: input, shape index: {}]
  %s1 = inlined_call_operand.hbm [shape: f32[2,2,128], index: 1, kind: input, shape index: {}]
  %s2 = inlined_call_operand.hbm [shape: f32[2,1,2,128], index: 2, kind: output, shape index: {0}]
  %s3 = inlined_call_operand.hbm [shape: f32[2,1,2,128], index: 3, kind: output, shape index: {1}]
  %4 = xla_tuple %s2, %s3
  %s5 = sld [smem:[#allocation0]]
  $region61: #{tpu_custom_call.1} parent=0
    _
  %s7 = ssub.s32 1, %s5
  %s8 = scalar_select 0, %s7, %s5
  $region1: #{tpu_custom_call.1} parent=0
    #allocation2 [shape = 'u8[8192]{0}', space=vmem, size = 0x2000, scoped, tag = 'input window, operand 0']
    #allocation3 [shape = 's32[2]{0}', space=sflag, size = 0x8, scoped, tag = 'scoped memory for tpu_custom_call.1']
    #allocation4 [shape = 's32[2]{0}', space=sflag, size = 0x8, scoped, tag = 'scoped memory for tpu_custom_call.1']
    #allocation5 [shape = 'u8[2048]{0}', space=vmem, size = 0x800, scoped, tag = 'input window, operand 1']
    #allocation6 [shape = 's32[2]{0}', space=sflag, size = 0x8, scoped, tag = 'scoped memory for tpu_custom_call.1']
    #allocation7 [shape = 'u8[2048]{0}', space=vmem, size = 0x800, scoped, tag = 'output window, operand 0']
    #allocation8 [shape = 'u8[2048]{0}', space=vmem, size = 0x800, scoped, tag = 'output window, operand 1']
    #allocation9 [shape = 's32[2]{0}', space=sflag, size = 0x8, scoped, tag = 'scoped memory for tpu_custom_call.1']
    %9 = vsyncpa [#allocation3], 0
    %s10 = scalar_lea.sflag [#allocation3], 1
    %11 = vsyncpa %s10, 0
    %12 = vsyncpa [#allocation6], 0
    %s13 = scalar_lea.sflag [#allocation6], 1
    %14 = vsyncpa %s13, 0
    %15 = vsyncpa [#allocation4], 0
    %s16 = scalar_lea.sflag [#allocation4], 1
    %17 = vsyncpa %s16, 0
    %18 = vsyncpa [#allocation9], 0
    %s19 = scalar_lea.sflag [#allocation9], 1
    %20 = vsyncpa %s19, 0
    loop: start=0, step=1, limit=4
    $region2: #{tpu_custom_call.1} parent=1 // loop_pre_header
      _
    $region3: #{tpu_custom_call.1} parent=1 // loop_header
      %s22 = sphi 0, %s26
      %p23 = scmp.ge.s32.totalorder %s22, 4
      %s29 = sphi 0, %s48
      %s30 = sphi 0, %s44
      %s31 = sphi 0, %s40
      %s32 = sphi 0, %s29
      %s33 = sphi 0, %s30
      %s34 = sphi 0, %s31
      %s35 = sphi 0, %s32
      %s36 = sphi 0, %s33
      %s37 = sphi 0, %s34
      %s55 = sphi 0, %s57
      %s58 = sphi 0, %s55
      %s59 = sphi 0, %s58
      %s75 = sphi 0, %s59
      %s85 = sphi 0, %s87
      %s88 = sphi 0, %s85
      %s89 = sphi 0, %s88
      %s105 = sphi 0, %s89
      %s113 = sphi 0, %s115
      %s116 = sphi 0, %s113
      %s117 = sphi 0, %s116
      %s133 = sphi 0, %s117
      %s141 = sphi 0, %s143
      %s144 = sphi 0, %s141
      %s145 = sphi 0, %s144
      %s161 = sphi 0, %s145
    $region4: #{tpu_custom_call.1} parent=1 // loop_header_branch
      %25 = sbr.rel (%p23) target = $region8
    $region5: #{tpu_custom_call.1} parent=1 // loop_body
      %s27 = ssub.s32 %s22, 1
      %s28 = ssub.s32 %s22, 2
      %s38 = sadd.s32 1, %s31
      %p39 = scmp.ge.s32.totalorder %s38, 1
      %s40 = scalar_select %p39, 0, %s38
      %s41 = sadd.s32 1, %s30
      %s42 = scalar_select %p39, %s41, %s30
      %p43 = scmp.ge.s32.totalorder %s42, 1
      %s44 = scalar_select %p43, 0, %s42
      %s45 = sadd.s32 1, %s29
      %s46 = scalar_select %p43, %s45, %s29
      %p47 = scmp.ge.s32.totalorder %s46, 2
      %s48 = scalar_select %p47, 0, %s46
      %s49 = sadd.s32 %s30, %s31
      %s50 = sadd.s32 %s44, %s40
      %s51 = ssub.s32 %s29, %s48
      %s52 = ssub.s32 %s49, %s50
      %s53 = sor.u32 %s51, %s52
      %p54 = scmp.eq.s32.totalorder %s53, 0
      %s56 = sadd.s32 %s55, 1
      %s57 = scalar_select %p54, %s55, %s56
      %p60 = pneg %p54
      %p61 = scmp.eq.s32.totalorder %s22, 1
      %p62 = por %p60, %p61
      %p63 = scmp.ne.s32.totalorder %s55, %s58
      %p64 = scmp.eq.s32.totalorder %s22, 0
      %p65 = por %p63, %p64
      %p66 = scmp.ne.s32.totalorder %s55, %s58
      %p67 = scmp.eq.s32.totalorder %s27, 1
      %p68 = por %p66, %p67
      %p69 = scmp.ne.s32.totalorder %s58, %s59
      %p70 = scmp.eq.s32.totalorder %s27, 0
      %p71 = por %p69, %p70
      %p72 = scmp.ne.s32.totalorder %s58, %s59
      %p73 = scmp.eq.s32.totalorder %s28, 1
      %p74 = por %p72, %p73
      %p76 = scmp.ne.s32.totalorder %s59, %s75
      %p77 = scmp.eq.s32.totalorder %s28, 0
      %p78 = por %p76, %p77
      %s79 = sadd.s32 %s30, %s31
      %s80 = sadd.s32 %s44, %s40
      %s81 = ssub.s32 %s29, %s48
      %s82 = ssub.s32 %s79, %s80
      %s83 = sor.u32 %s81, %s82
      %p84 = scmp.eq.s32.totalorder %s83, 0
      %s86 = sadd.s32 %s85, 1
      %s87 = scalar_select %p84, %s85, %s86
      %p90 = pneg %p84
      %p91 = scmp.eq.s32.totalorder %s22, 1
      %p92 = por %p90, %p91
      %p93 = scmp.ne.s32.totalorder %s85, %s88
      %p94 = scmp.eq.s32.totalorder %s22, 0
      %p95 = por %p93, %p94
      %p96 = scmp.ne.s32.totalorder %s85, %s88
      %p97 = scmp.eq.s32.totalorder %s27, 1
      %p98 = por %p96, %p97
      %p99 = scmp.ne.s32.totalorder %s88, %s89
      %p100 = scmp.eq.s32.totalorder %s27, 0
      %p101 = por %p99, %p100
      %p102 = scmp.ne.s32.totalorder %s88, %s89
      %p103 = scmp.eq.s32.totalorder %s28, 1
      %p104 = por %p102, %p103
      %p106 = scmp.ne.s32.totalorder %s89, %s105
      %p107 = scmp.eq.s32.totalorder %s28, 0
      %p108 = por %p106, %p107
      %s109 = ssub.s32 %s29, %s48
      %s110 = ssub.s32 %s30, %s44
      %s111 = sor.u32 %s109, %s110
      %p112 = scmp.eq.s32.totalorder %s111, 0
      %s114 = sadd.s32 %s113, 1
      %s115 = scalar_select %p112, %s113, %s114
      %p118 = pneg %p112
      %p119 = scmp.eq.s32.totalorder %s22, 1
      %p120 = por %p118, %p119
      %p121 = scmp.ne.s32.totalorder %s113, %s116
      %p122 = scmp.eq.s32.totalorder %s22, 0
      %p123 = por %p121, %p122
      %p124 = scmp.ne.s32.totalorder %s113, %s116
      %p125 = scmp.eq.s32.totalorder %s27, 1
      %p126 = por %p124, %p125
      %p127 = scmp.ne.s32.totalorder %s116, %s117
      %p128 = scmp.eq.s32.totalorder %s27, 0
      %p129 = por %p127, %p128
      %p130 = scmp.ne.s32.totalorder %s116, %s117
      %p131 = scmp.eq.s32.totalorder %s28, 1
      %p132 = por %p130, %p131
      %p134 = scmp.ne.s32.totalorder %s117, %s133
      %p135 = scmp.eq.s32.totalorder %s28, 0
      %p136 = por %p134, %p135
      %s137 = ssub.s32 %s29, %s48
      %s138 = ssub.s32 %s30, %s44
      %s139 = sor.u32 %s137, %s138
      %p140 = scmp.eq.s32.totalorder %s139, 0
      %s142 = sadd.s32 %s141, 1
      %s143 = scalar_select %p140, %s141, %s142
      %p146 = pneg %p140
      %p147 = scmp.eq.s32.totalorder %s22, 1
      %p148 = por %p146, %p147
      %p149 = scmp.ne.s32.totalorder %s141, %s144
      %p150 = scmp.eq.s32.totalorder %s22, 0
      %p151 = por %p149, %p150
      %p152 = scmp.ne.s32.totalorder %s141, %s144
      %p153 = scmp.eq.s32.totalorder %s27, 1
      %p154 = por %p152, %p153
      %p155 = scmp.ne.s32.totalorder %s144, %s145
      %p156 = scmp.eq.s32.totalorder %s27, 0
      %p157 = por %p155, %p156
      %p158 = scmp.ne.s32.totalorder %s144, %s145
      %p159 = scmp.eq.s32.totalorder %s28, 1
      %p160 = por %p158, %p159
      %p162 = scmp.ne.s32.totalorder %s145, %s161
      %p163 = scmp.eq.s32.totalorder %s28, 0
      %p164 = por %p162, %p163
      %p165 = scmp.le.s32.totalorder 1, %s22
      %p166 = scmp.lt.s32.totalorder %s22, 3
      %p167 = pnand %p165, %p166
      %p168 = pneg %p167
      // Predicated region
      $region9: #{tpu_custom_call.1} parent=5 // pred_check
        _
      $region10: #{tpu_custom_call.1} parent=5 // pred_check_branch
        %170 = sbr.rel (%p167) target = $region12
      $region11: #{tpu_custom_call.1} parent=5 // pred_region
        %s171 = ssub.s32 %s22, 1
      $region12: #{tpu_custom_call.1} parent=5 // pred_fallthru
        _
      %p172 = scmp.lt.s32.totalorder %s22, 2
      // Predicated region
      $region13: #{tpu_custom_call.1} parent=5 // pred_check
        %p173 = pneg %p172
      $region14: #{tpu_custom_call.1} parent=5 // pred_check_branch
        %175 = sbr.rel (%p173) target = $region16
      $region15: #{tpu_custom_call.1} parent=5 // pred_region
        // Predicated region
        $region17: #{tpu_custom_call.1} parent=15 // pred_check
          %p176 = pneg %p65
        $region18: #{tpu_custom_call.1} parent=15 // pred_check_branch
          %178 = sbr.rel (%p176) target = $region20
        $region19: #{tpu_custom_call.1} parent=15 // pred_region
          %s179 = sand.u32 %s55, 1
          %s180 = scalar_lea.sflag [#allocation3], %s179
          %s181 = sand.u32 %s55, 1
          %s182 = smul.addr %s181, 8
          %s183 = scalar_lea.vmem [#allocation2], %s182
          %s184 = sadd.s32 %s30, %s31
          %s186 = ssub.s32 128, 128
          %187 = vsyncadd %s180, %s186
          %s188 = smul.addr %s29, 4
          %s189 = sadd.s32 %s184, %s188
          %s190 = smul.addr %s189, 32
          %s191 = scalar_lea.hbm %s0, %s190
          %s192 = sshll.u32 %s183, 4
          %s193 = int_to_ptr.vmem [resolvable:$true] %s192
          %198 = dma.hbm_to_vmem [thread:$0]  %s191, 128, %s193, %s180, 32, 32, 2
        $region20: #{tpu_custom_call.1} parent=15 // pred_fallthru
          _
        // Predicated region
        $region21: #{tpu_custom_call.1} parent=15 // pred_check
          %p199 = pneg %p95
        $region22: #{tpu_custom_call.1} parent=15 // pred_check_branch
          %201 = sbr.rel (%p199) target = $region24
        $region23: #{tpu_custom_call.1} parent=15 // pred_region
          %s202 = sand.u32 %s85, 1
          %s203 = scalar_lea.sflag [#allocation6], %s202
          %s204 = sand.u32 %s85, 1
          %s205 = smul.addr %s204, 2
          %s206 = scalar_lea.vmem [#allocation5], %s205
          %s207 = sadd.s32 %s30, %s31
          %s209 = ssub.s32 32, 32
          %210 = vsyncadd %s203, %s209
          %s211 = sadd.s32 %s207, %s29
          %s212 = smul.addr %s211, 32
          %s213 = scalar_lea.hbm %s1, %s212
          %s215 = sshll.u32 %s206, 4
          %s216 = int_to_ptr.vmem [resolvable:$true] %s215
          %218 = dma.hbm_to_vmem [thread:$0]  %s213, 32, %s216, %s203
        $region24: #{tpu_custom_call.1} parent=15 // pred_fallthru
          _
      $region16: #{tpu_custom_call.1} parent=5 // pred_fallthru
        _
      %p219 = scmp.le.s32.totalorder 1, %s22
      %p220 = scmp.lt.s32.totalorder %s22, 3
      %p221 = pnand %p219, %p220
      %p222 = pneg %p221
      // Predicated region
      $region25: #{tpu_custom_call.1} parent=5 // pred_check
        _
      $region26: #{tpu_custom_call.1} parent=5 // pred_check_branch
        %224 = sbr.rel (%p221) target = $region28
      $region27: #{tpu_custom_call.1} parent=5 // pred_region
        %s225 = ssub.s32 %s22, 1
        %s226 = sand.u32 %s58, 1
        %s227 = scalar_lea.sflag [#allocation3], %s226
        %s228 = sand.u32 %s58, 1
        %s229 = smul.addr %s228, 8
        %s230 = scalar_lea.vmem [#allocation2], %s229
        // Predicated region
        $region29: #{tpu_custom_call.1} parent=27 // pred_check
          %p231 = pneg %p71
        $region30: #{tpu_custom_call.1} parent=27 // pred_check_branch
          %233 = sbr.rel (%p231) target = $region32
        $region31: #{tpu_custom_call.1} parent=27 // pred_region
          %234 = dma.done %s227, 128
        $region32: #{tpu_custom_call.1} parent=27 // pred_fallthru
          _
        %s235 = sand.u32 %s88, 1
        %s236 = scalar_lea.sflag [#allocation6], %s235
        %s237 = sand.u32 %s88, 1
        %s238 = smul.addr %s237, 2
        %s239 = scalar_lea.vmem [#allocation5], %s238
        // Predicated region
        $region33: #{tpu_custom_call.1} parent=27 // pred_check
          %p240 = pneg %p101
        $region34: #{tpu_custom_call.1} parent=27 // pred_check_branch
          %242 = sbr.rel (%p240) target = $region36
        $region35: #{tpu_custom_call.1} parent=27 // pred_region
          %243 = dma.done %s236, 32
        $region36: #{tpu_custom_call.1} parent=27 // pred_fallthru
          _
        %s244 = sand.u32 %s58, 1
        %s245 = scalar_lea.sflag [#allocation3], %s244
        %s246 = sand.u32 %s58, 1
        %s247 = smul.addr %s246, 8
        %s248 = scalar_lea.vmem [#allocation2], %s247
        %p249 = pneg %p71
        %p250 = pneg %p68
        %s251 = sand.u32 %s88, 1
        %s252 = scalar_lea.sflag [#allocation6], %s251
        %s253 = sand.u32 %s88, 1
        %s254 = smul.addr %s253, 2
        %s255 = scalar_lea.vmem [#allocation5], %s254
        %p256 = pneg %p101
        %p257 = pneg %p98
        %p258 = pneg %p129
        %p259 = pneg %p126
        %s260 = sand.u32 %s116, 1
        %s261 = scalar_lea.sflag [#allocation4], %s260
        %s262 = sand.u32 %s116, 1
        %s263 = smul.addr %s262, 2
        %s264 = scalar_lea.vmem [#allocation7], %s263
        %p265 = pneg %p157
        %p266 = pneg %p154
        %s267 = sand.u32 %s144, 1
        %s268 = scalar_lea.sflag [#allocation9], %s267
        %s269 = sand.u32 %s144, 1
        %s270 = smul.addr %s269, 2
        %s271 = scalar_lea.vmem [#allocation8], %s270
        %s272 = sadd.s32 %s33, %s34
        %s273 = sadd.s32 %s33, %s34
        %p274 = scmp.eq.s32.totalorder %s34, 0
        // Predicated region
        $region37: #{tpu_custom_call.1} parent=27 // pred_check
          %p275 = pneg %p274
        $region38: #{tpu_custom_call.1} parent=27 // pred_check_branch
          %277 = sbr.rel (%p275) target = $region40
        $region39: #{tpu_custom_call.1} parent=27 // pred_region
          %278 = vst [vmem:[%s264] sm:$0x3] 0.0
          %279 = vst [vmem:[%s271] sm:$0x3] 0.0
        $region40: #{tpu_custom_call.1} parent=27 // pred_fallthru
          _
        %v280 = vld [vmem:[%s230] sm:$0x3]
        %s281 = scalar_lea.vmem %s230, 2 [#allocation2]
        %v282 = vld [vmem:[%s281] sm:$0x3]
        %v283 = vmax.f32 %v280, %v282
        %s284 = scalar_lea.vmem %s230, 4 [#allocation2]
        %v285 = vld [vmem:[%s284] sm:$0x3]
        %v286 = vmax.f32 %v283, %v285
        %s287 = scalar_lea.vmem %s230, 6 [#allocation2]
        %v288 = vld [vmem:[%s287] sm:$0x3]
        %v289 = vmax.f32 %v286, %v288
        %v290 = vsub.f32 %v280, %v289
        %v291 = vmul.f32 %v290, 1.442695
        %v292 = vpow.pop %v291
        %v293 = vadd.f32 %v292, 0.0
        %v294 = vmul.f32 %v292, %v290
        %v295 = vadd.f32 %v294, 0.0
        %v296 = vsub.f32 %v282, %v289
        %v297 = vmul.f32 %v296, 1.442695
        %v298 = vpow.pop %v297
        %v299 = vadd.f32 %v293, %v298
        %v300 = vmul.f32 %v298, %v296
        %v301 = vadd.f32 %v295, %v300
        %v302 = vsub.f32 %v285, %v289
        %v303 = vmul.f32 %v302, 1.442695
        %v304 = vpow.pop %v303
        %v305 = vadd.f32 %v299, %v304
        %v306 = vmul.f32 %v304, %v302
        %v307 = vadd.f32 %v301, %v306
        %v308 = vsub.f32 %v288, %v289
        %v309 = vmul.f32 %v308, 1.442695
        %v310 = vpow.pop %v309
        %v311 = vadd.f32 %v305, %v310
        %v312 = vmul.f32 %v310, %v308
        %v313 = vadd.f32 %v307, %v312
        %v314 = vrcp.pop %v311
        %v315 = vmul.f32 %v311, %v314
        %v316 = vsub.f32 2.0, %v315
        %v317 = vmul.f32 %v314, %v316
        %v318 = vmul.f32 %v313, %v317
        %v319 = vlog2.pop %v311
        %v320 = vmul.f32 %v319, 0.6931472
        %v321 = vsub.f32 %v318, %v320
        %v322 = vld [vmem:[%s239] sm:$0x3]
        %v323 = vmul.f32 %v322, 0.003921569
        %v324 = vsub.f32 1.0, %v323
        %v325 = vld [vmem:[%s264] sm:$0x3]
        %v326 = vmul.f32 %v321, %v324
        %v327 = vadd.f32 %v325, %v326
        %328 = vst [vmem:[%s264] sm:$0x3] %v327
        %v329 = vld [vmem:[%s271] sm:$0x3]
        %v330 = vadd.f32 %v329, %v324
        %331 = vst [vmem:[%s271] sm:$0x3] %v330
        %s332 = sand.u32 %s116, 1
        %s333 = scalar_lea.sflag [#allocation4], %s332
        %s334 = sand.u32 %s116, 1
        %s335 = smul.addr %s334, 2
        %s336 = scalar_lea.vmem [#allocation7], %s335
        %s337 = sand.u32 %s144, 1
        %s338 = scalar_lea.sflag [#allocation9], %s337
        %s339 = sand.u32 %s144, 1
        %s340 = smul.addr %s339, 2
        %s341 = scalar_lea.vmem [#allocation8], %s340
        // Predicated region
        $region41: #{tpu_custom_call.1} parent=27 // pred_check
          %p342 = pneg %p126
        $region42: #{tpu_custom_call.1} parent=27 // pred_check_branch
          %344 = sbr.rel (%p342) target = $region44
        $region43: #{tpu_custom_call.1} parent=27 // pred_region
          %s346 = ssub.s32 32, 32
          %347 = vsyncadd %s333, %s346
          %s348 = sadd.s32 %s33, %s32
          %s349 = smul.addr %s348, 32
          %s350 = scalar_lea.hbm %s2, %s349
          %s352 = sshll.u32 %s336, 4
          %s353 = int_to_ptr.vmem [resolvable:$true] %s352
          %355 = dma.vmem_to_hbm [thread:$0]  %s353, 32, %s350, %s333
        $region44: #{tpu_custom_call.1} parent=27 // pred_fallthru
          _
        // Predicated region
        $region45: #{tpu_custom_call.1} parent=27 // pred_check
          %p356 = pneg %p154
        $region46: #{tpu_custom_call.1} parent=27 // pred_check_branch
          %358 = sbr.rel (%p356) target = $region48
        $region47: #{tpu_custom_call.1} parent=27 // pred_region
          %s360 = ssub.s32 32, 32
          %361 = vsyncadd %s338, %s360
          %s362 = sadd.s32 %s33, %s32
          %s363 = smul.addr %s362, 32
          %s364 = scalar_lea.hbm %s3, %s363
          %s366 = sshll.u32 %s341, 4
          %s367 = int_to_ptr.vmem [resolvable:$true] %s366
          %369 = dma.vmem_to_hbm [thread:$0]  %s367, 32, %s364, %s338
        $region48: #{tpu_custom_call.1} parent=27 // pred_fallthru
          _
      $region28: #{tpu_custom_call.1} parent=5 // pred_fallthru
        _
      %p370 = scmp.le.s32.totalorder 2, %s22
      // Predicated region
      $region49: #{tpu_custom_call.1} parent=5 // pred_check
        %p371 = pneg %p370
      $region50: #{tpu_custom_call.1} parent=5 // pred_check_branch
        %373 = sbr.rel (%p371) target = $region52
      $region51: #{tpu_custom_call.1} parent=5 // pred_region
        %s374 = ssub.s32 %s22, 2
        // Predicated region
        $region53: #{tpu_custom_call.1} parent=51 // pred_check
          %p375 = pneg %p132
        $region54: #{tpu_custom_call.1} parent=51 // pred_check_branch
          %377 = sbr.rel (%p375) target = $region56
        $region55: #{tpu_custom_call.1} parent=51 // pred_region
          %s378 = sand.u32 %s117, 1
          %s379 = scalar_lea.sflag [#allocation4], %s378
          %s380 = sand.u32 %s117, 1
          %s381 = smul.addr %s380, 2
          %s382 = scalar_lea.vmem [#allocation7], %s381
          %383 = dma.done %s379, 32
        $region56: #{tpu_custom_call.1} parent=51 // pred_fallthru
          _
        // Predicated region
        $region57: #{tpu_custom_call.1} parent=51 // pred_check
          %p384 = pneg %p160
        $region58: #{tpu_custom_call.1} parent=51 // pred_check_branch
          %386 = sbr.rel (%p384) target = $region60
        $region59: #{tpu_custom_call.1} parent=51 // pred_region
          %s387 = sand.u32 %s145, 1
          %s388 = scalar_lea.sflag [#allocation9], %s387
          %s389 = sand.u32 %s145, 1
          %s390 = smul.addr %s389, 2
          %s391 = scalar_lea.vmem [#allocation8], %s390
          %392 = dma.done %s388, 32
        $region60: #{tpu_custom_call.1} parent=51 // pred_fallthru
          _
      $region52: #{tpu_custom_call.1} parent=5 // pred_fallthru
        _
    $region6: #{tpu_custom_call.1} parent=1 // loop_footer
      %s26 = sadd.s32 1, %s22
    $region7: #{tpu_custom_call.1} parent=1 // loop_footer_branch
      %21 = sbr.rel target = $region3
    $region8: #{tpu_custom_call.1} parent=1 // loop_exit
      _
    %393 = vsyncpa [#allocation3], 1
    %s394 = scalar_lea.sflag [#allocation3], 1
    %395 = vsyncpa %s394, 1
    %396 = vsyncpa [#allocation6], 1
    %s397 = scalar_lea.sflag [#allocation6], 1
    %398 = vsyncpa %s397, 1
    %399 = vsyncpa [#allocation4], 1
    %s400 = scalar_lea.sflag [#allocation4], 1
    %401 = vsyncpa %s400, 1
    %402 = vsyncpa [#allocation9], 1
    %s403 = scalar_lea.sflag [#allocation9], 1
    %404 = vsyncpa %s403, 1

</llo_original>
